<compile_context>
chip_gen: v7x
topology: tpu7x:2x2x1
jax: 0.10.0
libtpu: 0.0.40
codegen_flags: <defaults>
</compile_context>

<pallas_src>
import math

import jax
import jax.numpy as jnp
from jax.experimental import pallas as pl
from jax.experimental.pallas import tpu as pltpu

NUM_SPLITS = 3
ALPHA = 12.0
_LANE = 128
_SUB = 8


def _make_kernel(n_rows, num_splits, alpha, ragged):
    inv_n = 1.0 / float(n_rows)
    kl_scale = float(alpha) / (float(num_splits) * float(n_rows))
    log_inv_s = math.log(1.0 / float(num_splits))
    # clip(mean_p, 1e-7) == (1/S) * clip(sum_p, S*1e-7); upper clip dropped (mean_p <= 1).
    clip_lo = float(num_splits) * 1e-7

    def kernel(logits_ref, tgt_ref, out_ref, sum_p_ref):
        s = pl.program_id(1)
        TN, C = sum_p_ref.shape

        # ---- softmax pieces for this split (no full-size logp materialized) ----
        x = logits_ref[0].astype(jnp.float32)                       # (TN, C)
        m = jnp.max(x, axis=-1, keepdims=True)
        z = x - m
        ez = jnp.exp(z)
        sez = jnp.sum(ez, axis=-1, keepdims=True)                   # (TN, 1)
        lsez = jnp.log(sez)
        rinv = 1.0 / sez                                            # exact; per-row only
        p = ez * rinv                                               # softmax probs
        pz_row = jnp.sum(ez * z, axis=-1, keepdims=True) * rinv     # sum_c p*z per row

        # ---- row-validity mask for the (possibly) ragged last row tile ----
        if ragged:
            row = jax.lax.broadcasted_iota(jnp.int32, (TN, 1), 0)
            valid = (pl.program_id(0) * TN + row) < n_rows
            mask_rows = lambda v: jnp.where(valid, v, 0.0)
            n_valid = jnp.minimum(n_rows - pl.program_id(0) * TN, TN).astype(jnp.float32)
        else:
            mask_rows = lambda v: v
            n_valid = float(TN)

        # sum_{rows,classes} p * log p for this split  (uses sum_c p == 1):
        #   sum_c p*(z - lsez) = pz_row - lsez
        plogp = jnp.sum(mask_rows(pz_row - lsez))

        @pl.when(s == 0)
        def _():
            sum_p_ref[...] = p
            # cross-entropy on split 0: -log p[target] = lsez - z[target]
            lane = jax.lax.broadcasted_iota(jnp.int32, (TN, C), 1)
            zt = jnp.sum(jnp.where(lane == tgt_ref[...], z, 0.0),
                         axis=-1, keepdims=True)
            ce_sum = jnp.sum(mask_rows(lsez - zt))
            out_ref[...] = jnp.full(out_ref.shape,
                                    ce_sum * inv_n + kl_scale * plogp, jnp.float32)

        @pl.when(s > 0)
        def _():
            sum_p_ref[...] += p
            out_ref[...] += jnp.full(out_ref.shape, kl_scale * plogp, jnp.float32)

        @pl.when(s == num_splits - 1)
        def _():
            sp = sum_p_ref[...]
            # log(mean_p) = log(max(sum_p, S*1e-7)) + log(1/S); the constant term sums to
            # log(1/S) * S * n_valid since sum_{r,c} sum_p == S * n_valid (to fp rounding).
            logc = jnp.log(jnp.maximum(sp, clip_lo))
            sp_logm = (jnp.sum(mask_rows(jnp.sum(sp * logc, axis=-1, keepdims=True)))
                       + log_inv_s * (num_splits * n_valid))
            out_ref[...] -= jnp.full(out_ref.shape, kl_scale * sp_logm, jnp.float32)

    return kernel


def _vmem_limit_bytes():
    """Generation-aware VMEM limit: ~108 MiB on v5e/v6e (128 MiB), ~54 MiB on v7x (64 MiB)."""
    cap = 64 * 1024 * 1024  # conservative fallback (v7x per-TensorCore VMEM)
    try:
        cap = int(pltpu.get_tpu_info().vmem_capacity_bytes)
    except Exception:
        pass
    return max(32 * 1024 * 1024, min(int(cap * 0.85), cap - 8 * 1024 * 1024))


def _pick_tile_n(n_rows, num_classes, itemsize, budget_bytes):
    """Largest row tile whose per-step working set fits the budget; prefers >= 2 tiles."""
    if n_rows <= _SUB:
        return n_rows
    c_pad = pl.cdiv(num_classes, _LANE) * _LANE        # physical lane padding
    # 2x double-buffered native-dtype input block + f32 sum_p scratch + ~5 f32 temporaries
    per_row = c_pad * (2 * itemsize + 6 * 4)
    n_up = pl.cdiv(n_rows, _SUB) * _SUB
    best = _SUB
    # TODO(synk): class-axis (online-softmax) tiling for vocabularies so large that even an
    # 8-row block of one split exceeds VMEM; current floor is an 8-row tile.
    for t in (8192, 4096, 2048, 1024, 512, 256, 128, 64, 32, 16, 8):
        if t > n_up:
            continue
        if t * per_row <= budget_bytes:
            best = t
            break
    # Keep at least two row tiles so the "parallel" grid axis can span both TensorCores
    # on v7x (harmless on single-TC v5e/v6e).
    if pl.cdiv(n_rows, best) < 2:
        half = pl.cdiv(pl.cdiv(n_rows, 2), _SUB) * _SUB
        best = min(best, max(_SUB, half))
    return best


def jsd_cross_entropy_loss(logit, target, num_splits=NUM_SPLITS, alpha=ALPHA):
    """logit: (B, C) float (any float dtype), target: (B,) int labels -> scalar f32."""
    B, C = logit.shape
    n = B // num_splits
    assert n * num_splits == B, "batch must be divisible by num_splits"

    # No class padding / dtype cast in the wrapper: the kernel reads logits in their native
    # dtype with the full (unpadded) class extent and upcasts in VMEM.
    logits_3d = logit.reshape(num_splits, n, C)
    tgt = target[:n].astype(jnp.int32).reshape(n, 1)

    vmem_limit = _vmem_limit_bytes()
    tile_n = _pick_tile_n(n, C, jnp.dtype(logit.dtype).itemsize, int(vmem_limit * 0.9))
    num_tiles = pl.cdiv(n, tile_n)
    ragged = (n % tile_n) != 0

    out = pl.pallas_call(
        _make_kernel(n, num_splits, alpha, ragged),
        out_shape=jax.ShapeDtypeStruct((num_tiles, _SUB, _LANE), jnp.float32),
        grid=(num_tiles, num_splits),
        in_specs=[
            pl.BlockSpec((1, tile_n, C), lambda i, s: (s, i, 0)),   # one split per step
            pl.BlockSpec((tile_n, 1), lambda i, s: (i, 0)),         # labels for this row tile
        ],
        out_specs=pl.BlockSpec((1, _SUB, _LANE), lambda i, s: (i, 0, 0)),  # resident across s
        scratch_shapes=[pltpu.VMEM((tile_n, C), jnp.float32)],      # sum_s softmax(logits_s)
        compiler_params=pltpu.CompilerParams(
            dimension_semantics=("parallel", "arbitrary"),
            vmem_limit_bytes=vmem_limit,
        ),
    )(logits_3d, tgt)

    # tiny final reduction over per-tile partials
    return jnp.sum(out[:, 0, 0])


def _reference(logit, target, num_splits=NUM_SPLITS, alpha=ALPHA):
    """Pure-JAX reference mirroring the PyTorch module."""
    B, C = logit.shape
    n = B // num_splits
    x = logit.astype(jnp.float32).reshape(num_splits, n, C)
    logp = jax.nn.log_softmax(x, axis=-1)
    probs = jnp.exp(logp)
    ce = -jnp.mean(jnp.take_along_axis(logp[0], target[:n, None].astype(jnp.int32), axis=-1))
    logm = jnp.log(jnp.clip(jnp.mean(probs, axis=0), 1e-7, 1.0))
    kl = jnp.sum(probs * (logp - logm[None])) / n
    return ce + alpha * kl / num_splits


if __name__ == "__main__":
    key = jax.random.PRNGKey(0)
    k1, k2 = jax.random.split(key)

    # C not a multiple of 128 (exercises the unpadded class path) and a row count that
    # produces a ragged last tile + a 2-tile "parallel" grid.
    split_size, num_classes = 24, 200
    B = NUM_SPLITS * split_size                 # 72
    logit = jax.random.normal(k1, (B, num_classes), dtype=jnp.float32)
    target = jax.random.randint(k2, (B,), 0, num_classes, dtype=jnp.int32)

    loss = jax.block_until_ready(jsd_cross_entropy_loss(logit, target))
    ref = jax.block_until_ready(_reference(logit, target))
    assert jnp.allclose(loss, ref, rtol=1e-3, atol=1e-3), (loss, ref)

    # bf16 logits: halved HBM read bytes; kernel upcasts in VMEM.
    logit_bf16 = logit.astype(jnp.bfloat16)
    loss16 = jax.block_until_ready(jsd_cross_entropy_loss(logit_bf16, target))
    ref16 = jax.block_until_ready(_reference(logit_bf16, target))
    assert jnp.allclose(loss16, ref16, rtol=1e-3, atol=1e-3), (loss16, ref16)

    print("KERNEL_OK")
</pallas_src>

<mosaic_0001>
module attributes {stable_mosaic.version = 11 : i64} {
  func.func @kernel(%arg0: i32, %arg1: i32, %arg2: memref<1x16x200xf32, #tpu.memory_space<vmem>>, %arg3: memref<16x1xi32, #tpu.memory_space<vmem>>, %arg4: memref<1x8x128xf32, #tpu.memory_space<vmem>>, %arg5: memref<16x200xf32, #tpu.memory_space<vmem>>) attributes {dimension_semantics = [#tpu.dimension_semantics<parallel>, #tpu.dimension_semantics<arbitrary>], iteration_bounds = array<i64: 2, 3>, scalar_prefetch = 0 : i64, scratch_operands = 1 : i64, tpu.core_type = #tpu.core_type<tc>, window_params = [{transform_indices = @transform_0, window_bounds = array<i64: 1, 16, 200>}, {transform_indices = @transform_1, window_bounds = array<i64: 16, 1>}, {transform_indices = @transform_2, window_bounds = array<i64: 1, 8, 128>}]} {
    %c0 = arith.constant 0 : index
    %c0_0 = arith.constant 0 : index
    %c0_1 = arith.constant 0 : index
    %0 = vector.load %arg2[%c0, %c0_0, %c0_1] : memref<1x16x200xf32, #tpu.memory_space<vmem>>, vector<1x16x200xf32>
    %1 = vector.shape_cast %0 : vector<1x16x200xf32> to vector<16x200xf32>
    %cst = arith.constant dense<0xFF800000> : vector<16xf32>
    %2 = vector.multi_reduction <maximumf>, %1, %cst [1] : vector<16x200xf32> to vector<16xf32>
    %3 = vector.shape_cast %2 : vector<16xf32> to vector<16x1xf32>
    %4 = vector.broadcast %3 : vector<16x1xf32> to vector<16x200xf32>
    %5 = arith.subf %1, %4 : vector<16x200xf32>
    %6 = math.exp %5 : vector<16x200xf32>
    %cst_2 = arith.constant dense<0.000000e+00> : vector<16xf32>
    %7 = vector.multi_reduction <add>, %6, %cst_2 [1] : vector<16x200xf32> to vector<16xf32>
    %8 = vector.shape_cast %7 : vector<16xf32> to vector<16x1xf32>
    %9 = math.log %8 : vector<16x1xf32>
    %cst_3 = arith.constant 1.000000e+00 : f32
    %10 = vector.broadcast %cst_3 : f32 to vector<16x1xf32>
    %11 = arith.divf %10, %8 : vector<16x1xf32>
    %12 = vector.broadcast %11 : vector<16x1xf32> to vector<16x200xf32>
    %13 = arith.mulf %6, %12 : vector<16x200xf32>
    %14 = arith.mulf %6, %5 : vector<16x200xf32>
    %cst_4 = arith.constant dense<0.000000e+00> : vector<16xf32>
    %15 = vector.multi_reduction <add>, %14, %cst_4 [1] : vector<16x200xf32> to vector<16xf32>
    %16 = vector.shape_cast %15 : vector<16xf32> to vector<16x1xf32>
    %17 = arith.mulf %16, %11 : vector<16x1xf32>
    %18 = tpu.iota {dimensions = array<i32: 0>} : vector<16x1xi32>
    %c16_i32 = arith.constant 16 : i32
    %19 = arith.muli %arg0, %c16_i32 : i32
    %20 = vector.broadcast %19 : i32 to vector<16x1xi32>
    %21 = arith.addi %20, %18 : vector<16x1xi32>
    %c24_i32 = arith.constant 24 : i32
    %22 = vector.broadcast %c24_i32 : i32 to vector<16x1xi32>
    %23 = arith.cmpi slt, %21, %22 : vector<16x1xi32>
    %c16_i32_5 = arith.constant 16 : i32
    %24 = arith.muli %arg0, %c16_i32_5 : i32
    %c24_i32_6 = arith.constant 24 : i32
    %25 = arith.subi %c24_i32_6, %24 : i32
    %c16_i32_7 = arith.constant 16 : i32
    %26 = arith.minsi %25, %c16_i32_7 : i32
    %27 = arith.sitofp %26 : i32 to f32
    %28 = arith.subf %17, %9 : vector<16x1xf32>
    %cst_8 = arith.constant 0.000000e+00 : f32
    %29 = vector.broadcast %cst_8 : f32 to vector<16x1xf32>
    %30 = arith.select %23, %28, %29 : vector<16x1xi1>, vector<16x1xf32>
    %31 = vector.shape_cast %30 : vector<16x1xf32> to vector<1x16x1xf32>
    %cst_9 = arith.constant dense<0.000000e+00> : vector<1xf32>
    %32 = vector.multi_reduction <add>, %31, %cst_9 [1, 2] : vector<1x16x1xf32> to vector<1xf32>
    %33 = vector.shape_cast %32 : vector<1xf32> to vector<1x1x1xf32>
    %34 = vector.extract %33[0, 0, 0] : f32 from vector<1x1x1xf32>
    %c0_i32 = arith.constant 0 : i32
    %35 = arith.cmpi eq, %arg1, %c0_i32 : i32
    %36 = arith.extui %35 : i1 to i32
    %c0_i32_10 = arith.constant 0 : i32
    %37 = arith.cmpi ne, %36, %c0_i32_10 : i32
    scf.if %37 {
      %c0_14 = arith.constant 0 : index
      %c0_15 = arith.constant 0 : index
      %44 = vector.load %arg5[%c0_14, %c0_15] : memref<16x200xf32, #tpu.memory_space<vmem>>, vector<16x200xf32>
      tpu.vector_store %arg5[%c0_14, %c0_15], %13 {strides = array<i32>} : memref<16x200xf32, #tpu.memory_space<vmem>>, vector<16x200xf32>,
      %45 = tpu.iota {dimensions = array<i32: 1>} : vector<16x200xi32>
      %c0_16 = arith.constant 0 : index
      %c0_17 = arith.constant 0 : index
      %46 = vector.load %arg3[%c0_16, %c0_17] : memref<16x1xi32, #tpu.memory_space<vmem>>, vector<16x1xi32>
      %47 = vector.broadcast %46 : vector<16x1xi32> to vector<16x200xi32>
      %48 = arith.cmpi eq, %45, %47 : vector<16x200xi32>
      %cst_18 = arith.constant 0.000000e+00 : f32
      %49 = vector.broadcast %cst_18 : f32 to vector<16x200xf32>
      %50 = arith.select %48, %5, %49 : vector<16x200xi1>, vector<16x200xf32>
      %cst_19 = arith.constant dense<0.000000e+00> : vector<16xf32>
      %51 = vector.multi_reduction <add>, %50, %cst_19 [1] : vector<16x200xf32> to vector<16xf32>
      %52 = vector.shape_cast %51 : vector<16xf32> to vector<16x1xf32>
      %53 = arith.subf %9, %52 : vector<16x1xf32>
      %cst_20 = arith.constant 0.000000e+00 : f32
      %54 = vector.broadcast %cst_20 : f32 to vector<16x1xf32>
      %55 = arith.select %23, %53, %54 : vector<16x1xi1>, vector<16x1xf32>
      %56 = vector.shape_cast %55 : vector<16x1xf32> to vector<1x16x1xf32>
      %cst_21 = arith.constant dense<0.000000e+00> : vector<1xf32>
      %57 = vector.multi_reduction <add>, %56, %cst_21 [1, 2] : vector<1x16x1xf32> to vector<1xf32>
      %58 = vector.shape_cast %57 : vector<1xf32> to vector<1x1x1xf32>
      %59 = vector.extract %58[0, 0, 0] : f32 from vector<1x1x1xf32>
      %cst_22 = arith.constant 0.0416666679 : f32
      %60 = arith.mulf %59, %cst_22 : f32
      %cst_23 = arith.constant 0.166666672 : f32
      %61 = arith.mulf %cst_23, %34 : f32
      %62 = arith.addf %60, %61 : f32
      %63 = vector.broadcast %62 : f32 to vector<1x8x128xf32>
      %c0_24 = arith.constant 0 : index
      %c0_25 = arith.constant 0 : index
      %c0_26 = arith.constant 0 : index
      %64 = vector.load %arg4[%c0_24, %c0_25, %c0_26] : memref<1x8x128xf32, #tpu.memory_space<vmem>>, vector<1x8x128xf32>
      tpu.vector_store %arg4[%c0_24, %c0_25, %c0_26], %63 {strides = array<i32>} : memref<1x8x128xf32, #tpu.memory_space<vmem>>, vector<1x8x128xf32>,
    } else {
    }
    %c0_i32_11 = arith.constant 0 : i32
    %38 = arith.cmpi sgt, %arg1, %c0_i32_11 : i32
    %39 = arith.extui %38 : i1 to i32
    %c0_i32_12 = arith.constant 0 : i32
    %40 = arith.cmpi ne, %39, %c0_i32_12 : i32
    scf.if %40 {
      %c0_14 = arith.constant 0 : index
      %c0_15 = arith.constant 0 : index
      %44 = vector.load %arg5[%c0_14, %c0_15] : memref<16x200xf32, #tpu.memory_space<vmem>>, vector<16x200xf32>
      %45 = arith.addf %44, %13 : vector<16x200xf32>
      %c0_16 = arith.constant 0 : index
      %c0_17 = arith.constant 0 : index
      %46 = vector.load %arg5[%c0_16, %c0_17] : memref<16x200xf32, #tpu.memory_space<vmem>>, vector<16x200xf32>
      tpu.vector_store %arg5[%c0_16, %c0_17], %45 {strides = array<i32>} : memref<16x200xf32, #tpu.memory_space<vmem>>, vector<16x200xf32>,
      %c0_18 = arith.constant 0 : index
      %c0_19 = arith.constant 0 : index
      %c0_20 = arith.constant 0 : index
      %47 = vector.load %arg4[%c0_18, %c0_19, %c0_20] : memref<1x8x128xf32, #tpu.memory_space<vmem>>, vector<1x8x128xf32>
      %cst_21 = arith.constant 0.166666672 : f32
      %48 = arith.mulf %cst_21, %34 : f32
      %49 = vector.broadcast %48 : f32 to vector<1x8x128xf32>
      %50 = arith.addf %47, %49 : vector<1x8x128xf32>
      %c0_22 = arith.constant 0 : index
      %c0_23 = arith.constant 0 : index
      %c0_24 = arith.constant 0 : index
      %51 = vector.load %arg4[%c0_22, %c0_23, %c0_24] : memref<1x8x128xf32, #tpu.memory_space<vmem>>, vector<1x8x128xf32>
      tpu.vector_store %arg4[%c0_22, %c0_23, %c0_24], %50 {strides = array<i32>} : memref<1x8x128xf32, #tpu.memory_space<vmem>>, vector<1x8x128xf32>,
    } else {
    }
    %c2_i32 = arith.constant 2 : i32
    %41 = arith.cmpi eq, %arg1, %c2_i32 : i32
    %42 = arith.extui %41 : i1 to i32
    %c0_i32_13 = arith.constant 0 : i32
    %43 = arith.cmpi ne, %42, %c0_i32_13 : i32
    scf.if %43 {
      %c0_14 = arith.constant 0 : index
      %c0_15 = arith.constant 0 : index
      %44 = vector.load %arg5[%c0_14, %c0_15] : memref<16x200xf32, #tpu.memory_space<vmem>>, vector<16x200xf32>
      %cst_16 = arith.constant 3.000000e-07 : f32
      %45 = vector.broadcast %cst_16 : f32 to vector<16x200xf32>
      %46 = arith.maximumf %44, %45 : vector<16x200xf32>
      %47 = math.log %46 : vector<16x200xf32>
      %48 = arith.mulf %44, %47 : vector<16x200xf32>
      %cst_17 = arith.constant dense<0.000000e+00> : vector<16xf32>
      %49 = vector.multi_reduction <add>, %48, %cst_17 [1] : vector<16x200xf32> to vector<16xf32>
      %50 = vector.shape_cast %49 : vector<16xf32> to vector<16x1xf32>
      %cst_18 = arith.constant 0.000000e+00 : f32
      %51 = vector.broadcast %cst_18 : f32 to vector<16x1xf32>
      %52 = arith.select %23, %50, %51 : vector<16x1xi1>, vector<16x1xf32>
      %53 = vector.shape_cast %52 : vector<16x1xf32> to vector<1x16x1xf32>
      %cst_19 = arith.constant dense<0.000000e+00> : vector<1xf32>
      %54 = vector.multi_reduction <add>, %53, %cst_19 [1, 2] : vector<1x16x1xf32> to vector<1xf32>
      %55 = vector.shape_cast %54 : vector<1xf32> to vector<1x1x1xf32>
      %56 = vector.extract %55[0, 0, 0] : f32 from vector<1x1x1xf32>
      %cst_20 = arith.constant 3.000000e+00 : f32
      %57 = arith.mulf %cst_20, %27 : f32
      %cst_21 = arith.constant -1.09861231 : f32
      %58 = arith.mulf %cst_21, %57 : f32
      %59 = arith.addf %56, %58 : f32
      %c0_22 = arith.constant 0 : index
      %c0_23 = arith.constant 0 : index
      %c0_24 = arith.constant 0 : index
      %60 = vector.load %arg4[%c0_22, %c0_23, %c0_24] : memref<1x8x128xf32, #tpu.memory_space<vmem>>, vector<1x8x128xf32>
      %cst_25 = arith.constant 0.166666672 : f32
      %61 = arith.mulf %cst_25, %59 : f32
      %62 = vector.broadcast %61 : f32 to vector<1x8x128xf32>
      %63 = arith.subf %60, %62 : vector<1x8x128xf32>
      %c0_26 = arith.constant 0 : index
      %c0_27 = arith.constant 0 : index
      %c0_28 = arith.constant 0 : index
      %64 = vector.load %arg4[%c0_26, %c0_27, %c0_28] : memref<1x8x128xf32, #tpu.memory_space<vmem>>, vector<1x8x128xf32>
      tpu.vector_store %arg4[%c0_26, %c0_27, %c0_28], %63 {strides = array<i32>} : memref<1x8x128xf32, #tpu.memory_space<vmem>>, vector<1x8x128xf32>,
    } else {
    }
    return
  }
  func.func @transform_0(%arg0: i32, %arg1: i32) -> (i32, i32, i32) {
    %c0_i32 = arith.constant 0 : i32
    %c0_i32_0 = arith.constant 0 : i32
    return %arg1, %arg0, %c0_i32 : i32, i32, i32
  }
  func.func @transform_1(%arg0: i32, %arg1: i32) -> (i32, i32) {
    %c0_i32 = arith.constant 0 : i32
    %c0_i32_0 = arith.constant 0 : i32
    return %arg0, %c0_i32 : i32, i32
  }
  func.func @transform_2(%arg0: i32, %arg1: i32) -> (i32, i32, i32) {
    %c0_i32 = arith.constant 0 : i32
    %c0_i32_0 = arith.constant 0 : i32
    %c0_i32_1 = arith.constant 0 : i32
    return %arg0, %c0_i32, %c0_i32_0 : i32, i32, i32
  }
}

</mosaic_0001>

<llo_original>
// kernel: tpu_custom_call.1
$region0: #{tpu_custom_call.1}
  #allocation0 [shape = 'u32[]', space=smem, size = 0x4, offset = 0x4, fixed_abs, tag = 'smem constant byte address 0x4 - core index']
  #allocation1 [shape = 'u32[144,128]{1,0:T(1,128)}', space=vmem, size = 0x12000, scoped, tag = 'internal scratch']
  #allocation2 [shape = 'f32[16,200]{1,0:T(8,128)}', space=vmem, size = 0x4000, scoped, tag = 'scratch operand']
  %s0 = inlined_call_operand.hbm [shape: f32[3,24,200], index: 0, kind: input, shape index: {}]
  %s1 = inlined_call_operand.vmem [shape: s32[24,1], index: 1, kind: input, shape index: {}]
  %s2 = inlined_call_operand.hbm [shape: f32[2,8,128], index: 2, kind: output, shape index: {}]
  %s3 = sld [smem:[#allocation0]]
  $region57: #{tpu_custom_call.1} parent=0
    _
  %s5 = ssub.s32 1, %s3
  %s6 = scalar_select 0, %s5, %s3
  $region1: #{tpu_custom_call.1} parent=0
    #allocation3 [shape = 'u8[32768]{0}', space=vmem, size = 0x8000, scoped, tag = 'input window, operand 0']
    #allocation4 [shape = 's32[2]{0}', space=sflag, size = 0x8, scoped, tag = 'scoped memory for tpu_custom_call.1']
    #allocation5 [shape = 's32[2]{0}', space=sflag, size = 0x8, scoped, tag = 'scoped memory for tpu_custom_call.1']
    #allocation6 [shape = 'u8[8192]{0}', space=vmem, size = 0x2000, scoped, tag = 'output window, operand 0']
    %7 = vsyncpa [#allocation4], 0
    %s8 = scalar_lea.sflag [#allocation4], 1
    %9 = vsyncpa %s8, 0
    %10 = vsyncpa [#allocation5], 0
    %s11 = scalar_lea.sflag [#allocation5], 1
    %12 = vsyncpa %s11, 0
    loop: start=0, step=1, limit=8
    $region2: #{tpu_custom_call.1} parent=1 // loop_pre_header
      _
    $region3: #{tpu_custom_call.1} parent=1 // loop_header
      %s14 = sphi 0, %s18
      %p15 = scmp.ge.s32.totalorder %s14, 8
      %s21 = sphi 0, %s33
      %s22 = sphi 0, %s29
      %s23 = sphi 0, %s21
      %s24 = sphi 0, %s22
      %s25 = sphi 0, %s23
      %s26 = sphi 0, %s24
      %s38 = sphi 0, %s40
      %s41 = sphi 0, %s38
      %s42 = sphi 0, %s41
      %s58 = sphi 0, %s42
      %s64 = sphi 0, %s66
      %s67 = sphi 0, %s64
      %s68 = sphi 0, %s67
      %s84 = sphi 0, %s68
      %s90 = sphi 0, %s92
      %s93 = sphi 0, %s90
      %s94 = sphi 0, %s93
      %s110 = sphi 0, %s94
    $region4: #{tpu_custom_call.1} parent=1 // loop_header_branch
      %17 = sbr.rel (%p15) target = $region8
    $region5: #{tpu_custom_call.1} parent=1 // loop_body
      %s19 = ssub.s32 %s14, 1
      %s20 = ssub.s32 %s14, 2
      %s27 = sadd.s32 1, %s22
      %p28 = scmp.ge.s32.totalorder %s27, 3
      %s29 = scalar_select %p28, 0, %s27
      %s30 = sadd.s32 1, %s21
      %s31 = scalar_select %p28, %s30, %s21
      %p32 = scmp.ge.s32.totalorder %s31, 2
      %s33 = scalar_select %p32, 0, %s31
      %s34 = ssub.s32 %s22, %s29
      %s35 = ssub.s32 %s21, %s33
      %s36 = sor.u32 %s34, %s35
      %p37 = scmp.eq.s32.totalorder %s36, 0
      %s39 = sadd.s32 %s38, 1
      %s40 = scalar_select %p37, %s38, %s39
      %p43 = pneg %p37
      %p44 = scmp.eq.s32.totalorder %s14, 5
      %p45 = por %p43, %p44
      %p46 = scmp.ne.s32.totalorder %s38, %s41
      %p47 = scmp.eq.s32.totalorder %s14, 0
      %p48 = por %p46, %p47
      %p49 = scmp.ne.s32.totalorder %s38, %s41
      %p50 = scmp.eq.s32.totalorder %s19, 5
      %p51 = por %p49, %p50
      %p52 = scmp.ne.s32.totalorder %s41, %s42
      %p53 = scmp.eq.s32.totalorder %s19, 0
      %p54 = por %p52, %p53
      %p55 = scmp.ne.s32.totalorder %s41, %s42
      %p56 = scmp.eq.s32.totalorder %s20, 5
      %p57 = por %p55, %p56
      %p59 = scmp.ne.s32.totalorder %s42, %s58
      %p60 = scmp.eq.s32.totalorder %s20, 0
      %p61 = por %p59, %p60
      %s62 = ssub.s32 %s21, %s33
      %p63 = scmp.eq.s32.totalorder %s62, 0
      %s65 = sadd.s32 %s64, 1
      %s66 = scalar_select %p63, %s64, %s65
      %p69 = pneg %p63
      %p70 = scmp.eq.s32.totalorder %s14, 5
      %p71 = por %p69, %p70
      %p72 = scmp.ne.s32.totalorder %s64, %s67
      %p73 = scmp.eq.s32.totalorder %s14, 0
      %p74 = por %p72, %p73
      %p75 = scmp.ne.s32.totalorder %s64, %s67
      %p76 = scmp.eq.s32.totalorder %s19, 5
      %p77 = por %p75, %p76
      %p78 = scmp.ne.s32.totalorder %s67, %s68
      %p79 = scmp.eq.s32.totalorder %s19, 0
      %p80 = por %p78, %p79
      %p81 = scmp.ne.s32.totalorder %s67, %s68
      %p82 = scmp.eq.s32.totalorder %s20, 5
      %p83 = por %p81, %p82
      %p85 = scmp.ne.s32.totalorder %s68, %s84
      %p86 = scmp.eq.s32.totalorder %s20, 0
      %p87 = por %p85, %p86
      %s88 = ssub.s32 %s21, %s33
      %p89 = scmp.eq.s32.totalorder %s88, 0
      %s91 = sadd.s32 %s90, 1
      %s92 = scalar_select %p89, %s90, %s91
      %p95 = pneg %p89
      %p96 = scmp.eq.s32.totalorder %s14, 5
      %p97 = por %p95, %p96
      %p98 = scmp.ne.s32.totalorder %s90, %s93
      %p99 = scmp.eq.s32.totalorder %s14, 0
      %p100 = por %p98, %p99
      %p101 = scmp.ne.s32.totalorder %s90, %s93
      %p102 = scmp.eq.s32.totalorder %s19, 5
      %p103 = por %p101, %p102
      %p104 = scmp.ne.s32.totalorder %s93, %s94
      %p105 = scmp.eq.s32.totalorder %s19, 0
      %p106 = por %p104, %p105
      %p107 = scmp.ne.s32.totalorder %s93, %s94
      %p108 = scmp.eq.s32.totalorder %s20, 5
      %p109 = por %p107, %p108
      %p111 = scmp.ne.s32.totalorder %s94, %s110
      %p112 = scmp.eq.s32.totalorder %s20, 0
      %p113 = por %p111, %p112
      %p114 = scmp.le.s32.totalorder 1, %s14
      %p115 = scmp.lt.s32.totalorder %s14, 7
      %p116 = pnand %p114, %p115
      %p117 = pneg %p116
      // Predicated region
      $region9: #{tpu_custom_call.1} parent=5 // pred_check
        _
      $region10: #{tpu_custom_call.1} parent=5 // pred_check_branch
        %119 = sbr.rel (%p116) target = $region12
      $region11: #{tpu_custom_call.1} parent=5 // pred_region
        %s120 = ssub.s32 %s14, 1
      $region12: #{tpu_custom_call.1} parent=5 // pred_fallthru
        _
      %p121 = scmp.lt.s32.totalorder %s14, 6
      // Predicated region
      $region13: #{tpu_custom_call.1} parent=5 // pred_check
        %p122 = pneg %p121
      $region14: #{tpu_custom_call.1} parent=5 // pred_check_branch
        %124 = sbr.rel (%p122) target = $region16
      $region15: #{tpu_custom_call.1} parent=5 // pred_region
        // Predicated region
        $region17: #{tpu_custom_call.1} parent=15 // pred_check
          %p125 = pneg %p48
        $region18: #{tpu_custom_call.1} parent=15 // pred_check_branch
          %127 = sbr.rel (%p125) target = $region20
        $region19: #{tpu_custom_call.1} parent=15 // pred_region
          %s128 = sand.u32 %s38, 1
          %s129 = scalar_lea.sflag [#allocation4], %s128
          %s130 = sand.u32 %s38, 1
          %s131 = smul.addr %s130, 32
          %s132 = scalar_lea.vmem [#allocation3], %s131
          %s133 = smul.u32 2, %s21
          %s134 = ssub.s32 3, %s133
          %p135 = scmp.lt.s32.totalorder %s134, 2
          %s136 = scalar_select %p135, %s134, 2
          %s137 = smul.u32 128, %s136
          %s138 = smul.u32 %s137, 2
          %s140 = ssub.s32 512, %s138
          %141 = vsyncadd %s129, %s140
          %p142 = scmp.ne.s32.totalorder 0, %s138
          %s143 = smul.addr %s133, 2
          %s144 = smul.addr %s22, 6
          %s145 = sadd.s32 %s143, %s144
          %s146 = smul.addr %s145, 128
          %s147 = scalar_lea.hbm %s0, %s146
          %s148 = smul.u32 16, %s136
          %s149 = sshll.u32 %s132, 4
          %s150 = int_to_ptr.vmem [resolvable:$true] %s149
          %s151 = sshll.u32 %s148, 4
          %155 = dma.hbm_to_vmem [thread:$0]  (%p142), %s147, %s151, %s150, %s129, 256, 256, 16
        $region20: #{tpu_custom_call.1} parent=15 // pred_fallthru
          _
        // Predicated region
        $region21: #{tpu_custom_call.1} parent=15 // pred_check
          %p156 = pneg %p74
        $region22: #{tpu_custom_call.1} parent=15 // pred_check_branch
          %158 = sbr.rel (%p156) target = $region24
        $region23: #{tpu_custom_call.1} parent=15 // pred_region
          %s159 = smul.u32 2, %s21
          %s160 = ssub.s32 3, %s159
          %p161 = scmp.lt.s32.totalorder %s160, 2
          %s162 = scalar_select %p161, %s160, 2
          %s163 = smul.u32 128, %s162
          %p164 = scmp.lt.s32.totalorder %s159, 2
          %s165 = scalar_select %p164, %s159, 2
          %s166 = smul.addr %s165, 8
          %s167 = scalar_lea.vmem %s1, %s166
          %s168 = smul.u32 2, %s21
          %s169 = ssub.s32 3, %s168
          %p170 = scmp.lt.s32.totalorder %s169, 2
          %s171 = scalar_select %p170, %s169, 2
          %s172 = smul.u32 128, %s171
        $region24: #{tpu_custom_call.1} parent=15 // pred_fallthru
          _
      $region16: #{tpu_custom_call.1} parent=5 // pred_fallthru
        _
      %p173 = scmp.le.s32.totalorder 1, %s14
      %p174 = scmp.lt.s32.totalorder %s14, 7
      %p175 = pnand %p173, %p174
      %p176 = pneg %p175
      // Predicated region
      $region25: #{tpu_custom_call.1} parent=5 // pred_check
        _
      $region26: #{tpu_custom_call.1} parent=5 // pred_check_branch
        %178 = sbr.rel (%p175) target = $region28
      $region27: #{tpu_custom_call.1} parent=5 // pred_region
        %s179 = ssub.s32 %s14, 1
        %s180 = sand.u32 %s41, 1
        %s181 = scalar_lea.sflag [#allocation4], %s180
        %s182 = sand.u32 %s41, 1
        %s183 = smul.addr %s182, 32
        %s184 = scalar_lea.vmem [#allocation3], %s183
        // Predicated region
        $region29: #{tpu_custom_call.1} parent=27 // pred_check
          %p185 = pneg %p54
        $region30: #{tpu_custom_call.1} parent=27 // pred_check_branch
          %187 = sbr.rel (%p185) target = $region32
        $region31: #{tpu_custom_call.1} parent=27 // pred_region
          %188 = dma.done %s181, 512
        $region32: #{tpu_custom_call.1} parent=27 // pred_fallthru
          _
        %s189 = sand.u32 %s41, 1
        %s190 = scalar_lea.sflag [#allocation4], %s189
        %s191 = sand.u32 %s41, 1
        %s192 = smul.addr %s191, 32
        %s193 = scalar_lea.vmem [#allocation3], %s192
        %p194 = pneg %p54
        %p195 = pneg %p51
        %s196 = smul.u32 2, %s23
        %s197 = ssub.s32 3, %s196
        %p198 = scmp.lt.s32.totalorder %s197, 2
        %s199 = scalar_select %p198, %s197, 2
        %s200 = smul.u32 128, %s199
        %p201 = scmp.lt.s32.totalorder %s196, 2
        %s202 = scalar_select %p201, %s196, 2
        %s203 = smul.addr %s202, 8
        %s204 = scalar_lea.vmem %s1, %s203
        %p205 = pneg %p80
        %p206 = pneg %p77
        %p207 = pneg %p106
        %p208 = pneg %p103
        %s209 = sand.u32 %s93, 1
        %s210 = scalar_lea.sflag [#allocation5], %s209
        %s211 = sand.u32 %s93, 1
        %s212 = smul.addr %s211, 8
        %s213 = scalar_lea.vmem [#allocation6], %s212
        %s214 = smul.u32 2, %s23
        %s215 = ssub.s32 3, %s214
        %p216 = scmp.lt.s32.totalorder %s215, 2
        %s217 = scalar_select %p216, %s215, 2
        %s218 = smul.u32 128, %s217
        %s219 = smul.u32 %s218, 2
        %s220 = smul.u32 2, %s23
        %s221 = ssub.s32 3, %s220
        %p222 = scmp.lt.s32.totalorder %s221, 2
        %s223 = scalar_select %p222, %s221, 2
        %s224 = smul.u32 128, %s223
        %p225 = scmp.lt.s32.totalorder %s220, 2
        %s226 = scalar_select %p225, %s220, 2
        %s227 = smul.addr %s226, 8
        %s228 = scalar_lea.vmem %s1, %s227
        %s229 = smul.u32 2, %s23
        %s230 = ssub.s32 3, %s229
        %p231 = scmp.lt.s32.totalorder %s230, 2
        %s232 = scalar_select %p231, %s230, 2
        %s233 = smul.u32 128, %s232
        %v234 = vld [vmem:[%s184] sm:$0xff]
        %v235 = vld [vmem:[%s184 + $0x8] sm:$0xff]
        %v236 = vld [vmem:[%s184 + $0x10] sm:$0xff]
        %v237 = vld [vmem:[%s184 + $0x18] sm:$0xff]
        %vm238 = vcmask 588800
        %v239 = vsel %vm238, %v235, -inf
        %v240 = vmax.f32 %v234, %v239
        %241 = vmax.xlane.f32.xlu0 %v240
        %v242 = vpop.xlane.xlu0 %241
        %v243 = vsel %vm238, %v237, -inf
        %v244 = vmax.f32 %v236, %v243
        %245 = vmax.xlane.f32.xlu0 %v244
        %v246 = vpop.xlane.xlu0 %245
        %v247 = vsub.f32 %v234, %v242
        %v248 = vsub.f32 %v235, %v242
        %v249 = vsub.f32 %v236, %v246
        %v250 = vsub.f32 %v237, %v246
        %v251 = vmul.f32 %v247, 1.442695
        %v252 = vpow.pop %v251
        %v253 = vmul.f32 %v248, 1.442695
        %v254 = vpow.pop %v253
        %v255 = vmul.f32 %v249, 1.442695
        %v256 = vpow.pop %v255
        %v257 = vmul.f32 %v250, 1.442695
        %v258 = vpow.pop %v257
        %v259 = vsel %vm238, %v254, 0.0
        %v260 = vadd.f32 %v252, %v259
        %261 = vadd.xlane.f32.xlu0 %v260
        %v262 = vpop.xlane.xlu0 %261
        %v263 = vsel %vm238, %v258, 0.0
        %v264 = vadd.f32 %v256, %v263
        %265 = vadd.xlane.f32.xlu0 %v264
        %v266 = vpop.xlane.xlu0 %265
        %v267 = vlog2.pop %v262
        %v268 = vmul.f32 %v267, 0.6931472
        %v269 = vlog2.pop %v266
        %v270 = vmul.f32 %v269, 0.6931472
        %v271 = vrcp.pop %v262
        %v272 = vmul.f32 1.0, %v271
        %v273 = vrcp.pop %v266
        %v274 = vmul.f32 1.0, %v273
        %v275 = vmul.f32 %v252, %v272
        %v276 = vmul.f32 %v254, %v272
        %v277 = vmul.f32 %v256, %v274
        %v278 = vmul.f32 %v258, %v274
        %v279 = vmul.f32 %v252, %v247
        %v280 = vmul.f32 %v254, %v248
        %v281 = vmul.f32 %v256, %v249
        %v282 = vmul.f32 %v258, %v250
        %v283 = vsel %vm238, %v280, 0.0
        %v284 = vadd.f32 %v279, %v283
        %285 = vadd.xlane.f32.xlu0 %v284
        %v286 = vpop.xlane.xlu0 %285
        %v287 = vsel %vm238, %v282, 0.0
        %v288 = vadd.f32 %v281, %v287
        %289 = vadd.xlane.f32.xlu0 %v288
        %v290 = vpop.xlane.xlu0 %289
        %v291 = vmul.f32 %v286, %v272
        %v292 = vmul.f32 %v290, %v274
        %v293 = vlaneseq
        %v294 = vshrl.u32 %v293, 7
        %v295 = vadd.s32 %v294, 8
        %s296 = smul.u32 %s23, 16
        %v297 = vstv %s296
        %v298 = vadd.s32 %v297, %v294
        %v299 = vadd.s32 %v297, %v295
        %vm300 = vcmp.lt.s32.totalorder %v298, 24
        %vm301 = vcmp.lt.s32.totalorder %v299, 24
        %s302 = ssub.s32 24, %s296
        %p303 = scmp.lt.s32.totalorder %s302, 16
        %s304 = scalar_select %p303, %s302, 16
        %s305 = scvt.s32.f32 %s304
        %v306 = vsub.f32 %v291, %v268
        %v307 = vsub.f32 %v292, %v270
        %v308 = vsel %vm300, %v306, 0.0
        %v309 = vsel %vm301, %v307, 0.0
        %vm310 = vcmask 7168
        %v311 = vsel %vm310, %v308, 0.0
        %v312 = vsel %vm310, %v309, 0.0
        %v313 = vadd.f32 %v311, %v312
        %314 = vadd.xlane.f32.xlu0 %v313
        %v315 = vpop.xlane.xlu0 %314
        %v316 = vrot.slane %v315, 4
        %v317 = vadd.f32 %v315, %v316
        %v318 = vrot.slane %v317, 2
        %v319 = vadd.f32 %v317, %v318
        %v320 = vrot.slane %v319, 1
        %v321 = vadd.f32 %v319, %v320
        %s322 = vtos %v321
        %p323 = scmp.eq.s32.totalorder %s24, 0
        // Predicated region
        $region33: #{tpu_custom_call.1} parent=27 // pred_check
          %p324 = pneg %p323
        $region34: #{tpu_custom_call.1} parent=27 // pred_check_branch
          %326 = sbr.rel (%p324) target = $region36
        $region35: #{tpu_custom_call.1} parent=27 // pred_region
          %327 = vst [vmem:[#allocation2] sm:$0xff] %v275
          %328 = vst.msk [vmem:[#allocation2 + $0x8] sm:$0xff] %vm238, %v276
          %329 = vst [vmem:[#allocation2 + $0x10] sm:$0xff] %v277
          %330 = vst.msk [vmem:[#allocation2 + $0x18] sm:$0xff] %vm238, %v278
          %v331 = vlaneseq
          %v332 = vand.u32 %v331, 127
          %v333 = vadd.s32 %v332, 128
          %v334 = vld [vmem:[%s228] sm:$0xff]
          %v335 = vld [vmem:[%s228 + $0x8] sm:$0xff]
          %336 = vset.pattern.permute.xlu0 0
          %337 = vperm.xlu0 %336, %v334
          %v338 = vpop.permute.xlu0 %337
          %339 = vset.pattern.permute.xlu0 0
          %340 = vperm.xlu0 %339, %v335
          %v341 = vpop.permute.xlu0 %340
          %vm342 = vcmp.eq.s32.totalorder %v332, %v338
          %vm343 = vcmp.eq.s32.totalorder %v333, %v338
          %vm344 = vcmp.eq.s32.totalorder %v332, %v341
          %vm345 = vcmp.eq.s32.totalorder %v333, %v341
          %v346 = vsel %vm342, %v247, 0.0
          %v347 = vsel %vm343, %v248, 0.0
          %v348 = vsel %vm344, %v249, 0.0
          %v349 = vsel %vm345, %v250, 0.0
          %v350 = vsel %vm238, %v347, 0.0
          %v351 = vadd.f32 %v346, %v350
          %352 = vadd.xlane.f32.xlu0 %v351
          %v353 = vpop.xlane.xlu0 %352
          %v354 = vsel %vm238, %v349, 0.0
          %v355 = vadd.f32 %v348, %v354
          %356 = vadd.xlane.f32.xlu0 %v355
          %v357 = vpop.xlane.xlu0 %356
          %v358 = vsub.f32 %v268, %v353
          %v359 = vsub.f32 %v270, %v357
          %v360 = vsel %vm300, %v358, 0.0
          %v361 = vsel %vm301, %v359, 0.0
          %v362 = vsel %vm310, %v360, 0.0
          %v363 = vsel %vm310, %v361, 0.0
          %v364 = vadd.f32 %v362, %v363
          %365 = vadd.xlane.f32.xlu0 %v364
          %v366 = vpop.xlane.xlu0 %365
          %v367 = vrot.slane %v366, 4
          %v368 = vadd.f32 %v366, %v367
          %v369 = vrot.slane %v368, 2
          %v370 = vadd.f32 %v368, %v369
          %v371 = vrot.slane %v370, 1
          %v372 = vadd.f32 %v370, %v371
          %s373 = vtos %v372
          %s374 = smul.f32 %s373, 0.041666668
          %s375 = smul.f32 %s322, 0.16666667
          %s376 = sadd.f32 %s374, %s375
          %v377 = vstv %s376
          %378 = vst [vmem:[%s213] sm:$0xff] %v377
        $region36: #{tpu_custom_call.1} parent=27 // pred_fallthru
          _
        %p379 = scmp.gt.s32.totalorder %s24, 0
        // Predicated region
        $region37: #{tpu_custom_call.1} parent=27 // pred_check
          %p380 = pneg %p379
        $region38: #{tpu_custom_call.1} parent=27 // pred_check_branch
          %382 = sbr.rel (%p380) target = $region40
        $region39: #{tpu_custom_call.1} parent=27 // pred_region
          %v383 = vld [vmem:[#allocation2] sm:$0xff]
          %v384 = vld [vmem:[#allocation2 + $0x8] sm:$0xff]
          %v385 = vld [vmem:[#allocation2 + $0x10] sm:$0xff]
          %v386 = vld [vmem:[#allocation2 + $0x18] sm:$0xff]
          %v387 = vadd.f32 %v383, %v275
          %v388 = vadd.f32 %v384, %v276
          %v389 = vadd.f32 %v385, %v277
          %v390 = vadd.f32 %v386, %v278
          %391 = vst [vmem:[#allocation2] sm:$0xff] %v387
          %392 = vst.msk [vmem:[#allocation2 + $0x8] sm:$0xff] %vm238, %v388
          %393 = vst [vmem:[#allocation2 + $0x10] sm:$0xff] %v389
          %394 = vst.msk [vmem:[#allocation2 + $0x18] sm:$0xff] %vm238, %v390
          %v395 = vld [vmem:[%s213] sm:$0xff]
          %s396 = smul.f32 %s322, 0.16666667
          %v397 = vstv %s396
          %v398 = vadd.f32 %v395, %v397
          %399 = vst [vmem:[%s213] sm:$0xff] %v398
        $region40: #{tpu_custom_call.1} parent=27 // pred_fallthru
          _
        %p400 = scmp.eq.s32.totalorder %s24, 2
        // Predicated region
        $region41: #{tpu_custom_call.1} parent=27 // pred_check
          %p401 = pneg %p400
        $region42: #{tpu_custom_call.1} parent=27 // pred_check_branch
          %403 = sbr.rel (%p401) target = $region44
        $region43: #{tpu_custom_call.1} parent=27 // pred_region
          %v404 = vld [vmem:[#allocation2] sm:$0xff]
          %v405 = vld [vmem:[#allocation2 + $0x8] sm:$0xff]
          %v406 = vld [vmem:[#allocation2 + $0x10] sm:$0xff]
          %v407 = vld [vmem:[#allocation2 + $0x18] sm:$0xff]
          %v408 = vmax.f32 %v404, 3e-07
          %v409 = vmax.f32 %v405, 3e-07
          %v410 = vmax.f32 %v406, 3e-07
          %v411 = vmax.f32 %v407, 3e-07
          %v412 = vlog2.pop %v408
          %v413 = vmul.f32 %v412, 0.6931472
          %v414 = vlog2.pop %v409
          %v415 = vmul.f32 %v414, 0.6931472
          %v416 = vlog2.pop %v410
          %v417 = vmul.f32 %v416, 0.6931472
          %v418 = vlog2.pop %v411
          %v419 = vmul.f32 %v418, 0.6931472
          %v420 = vmul.f32 %v404, %v413
          %v421 = vmul.f32 %v405, %v415
          %v422 = vmul.f32 %v406, %v417
          %v423 = vmul.f32 %v407, %v419
          %v424 = vsel %vm238, %v421, 0.0
          %v425 = vadd.f32 %v420, %v424
          %426 = vadd.xlane.f32.xlu0 %v425
          %v427 = vpop.xlane.xlu0 %426
          %v428 = vsel %vm238, %v423, 0.0
          %v429 = vadd.f32 %v422, %v428
          %430 = vadd.xlane.f32.xlu0 %v429
          %v431 = vpop.xlane.xlu0 %430
          %v432 = vsel %vm300, %v427, 0.0
          %v433 = vsel %vm301, %v431, 0.0
          %v434 = vsel %vm310, %v432, 0.0
          %v435 = vsel %vm310, %v433, 0.0
          %v436 = vadd.f32 %v434, %v435
          %437 = vadd.xlane.f32.xlu0 %v436
          %v438 = vpop.xlane.xlu0 %437
          %v439 = vrot.slane %v438, 4
          %v440 = vadd.f32 %v438, %v439
          %v441 = vrot.slane %v440, 2
          %v442 = vadd.f32 %v440, %v441
          %v443 = vrot.slane %v442, 1
          %v444 = vadd.f32 %v442, %v443
          %s445 = vtos %v444
          %s446 = smul.f32 %s305, 3.0
          %s447 = smul.f32 %s446, -1.0986123
          %s448 = sadd.f32 %s445, %s447
          %v449 = vld [vmem:[%s213] sm:$0xff]
          %s450 = smul.f32 %s448, 0.16666667
          %v451 = vstv %s450
          %v452 = vsub.f32 %v449, %v451
          %453 = vst [vmem:[%s213] sm:$0xff] %v452
        $region44: #{tpu_custom_call.1} parent=27 // pred_fallthru
          _
        %s454 = sand.u32 %s93, 1
        %s455 = scalar_lea.sflag [#allocation5], %s454
        %s456 = sand.u32 %s93, 1
        %s457 = smul.addr %s456, 8
        %s458 = scalar_lea.vmem [#allocation6], %s457
        // Predicated region
        $region45: #{tpu_custom_call.1} parent=27 // pred_check
          %p459 = pneg %p103
        $region46: #{tpu_custom_call.1} parent=27 // pred_check_branch
          %461 = sbr.rel (%p459) target = $region48
        $region47: #{tpu_custom_call.1} parent=27 // pred_region
          %s463 = ssub.s32 128, 128
          %464 = vsyncadd %s455, %s463
          %s465 = smul.addr %s23, 128
          %s466 = scalar_lea.hbm %s2, %s465
          %s468 = sshll.u32 %s458, 4
          %s469 = int_to_ptr.vmem [resolvable:$true] %s468
          %471 = dma.vmem_to_hbm [thread:$0]  %s469, 128, %s466, %s455
        $region48: #{tpu_custom_call.1} parent=27 // pred_fallthru
          _
      $region28: #{tpu_custom_call.1} parent=5 // pred_fallthru
        _
      %p472 = scmp.le.s32.totalorder 2, %s14
      // Predicated region
      $region49: #{tpu_custom_call.1} parent=5 // pred_check
        %p473 = pneg %p472
      $region50: #{tpu_custom_call.1} parent=5 // pred_check_branch
        %475 = sbr.rel (%p473) target = $region52
      $region51: #{tpu_custom_call.1} parent=5 // pred_region
        %s476 = ssub.s32 %s14, 2
        // Predicated region
        $region53: #{tpu_custom_call.1} parent=51 // pred_check
          %p477 = pneg %p109
        $region54: #{tpu_custom_call.1} parent=51 // pred_check_branch
          %479 = sbr.rel (%p477) target = $region56
        $region55: #{tpu_custom_call.1} parent=51 // pred_region
          %s480 = sand.u32 %s94, 1
          %s481 = scalar_lea.sflag [#allocation5], %s480
          %s482 = sand.u32 %s94, 1
          %s483 = smul.addr %s482, 8
          %s484 = scalar_lea.vmem [#allocation6], %s483
          %485 = dma.done %s481, 128
        $region56: #{tpu_custom_call.1} parent=51 // pred_fallthru
          _
      $region52: #{tpu_custom_call.1} parent=5 // pred_fallthru
        _
    $region6: #{tpu_custom_call.1} parent=1 // loop_footer
      %s18 = sadd.s32 1, %s14
    $region7: #{tpu_custom_call.1} parent=1 // loop_footer_branch
      %13 = sbr.rel target = $region3
    $region8: #{tpu_custom_call.1} parent=1 // loop_exit
      _
    %486 = vsyncpa [#allocation4], 1
    %s487 = scalar_lea.sflag [#allocation4], 1
    %488 = vsyncpa %s487, 1
    %489 = vsyncpa [#allocation5], 1
    %s490 = scalar_lea.sflag [#allocation5], 1
    %491 = vsyncpa %s490, 1

</llo_original>
